<compile_context>
chip_gen: v5e
topology: v5e:2x2
jax: 0.10.0
libtpu: 0.0.40
codegen_flags: <defaults>
</compile_context>

<pallas_src>
import functools

import jax
import jax.numpy as jnp
from jax.experimental import pallas as pl
from jax.experimental.pallas import tpu as pltpu

LANE = 128        # TPU lane width; output dim is padded to a multiple of this.
MXU_TILE = 256    # v6e/v7x MXU dim; also a multiple of v5e's 128.


def _round_up(n, m):
    return ((n + m - 1) // m) * m


def _default_epilogue_dtype():
    """bf16 bias+ReLU epilogue on chips with a bf16 VPU (v6e/v7x), f32 otherwise."""
    try:
        kind = jax.devices()[0].device_kind.lower()
    except Exception:  # pragma: no cover - be conservative if query fails
        return jnp.float32
    if any(v in kind for v in ("v2", "v3", "v4", "v5")):
        return jnp.float32
    return jnp.bfloat16


def _choose_tiling(B, tile_m):
    """Pick (tile_m_eff, b_pad, grid_m) for the batch dimension."""
    B = max(B, 1)
    if B <= MXU_TILE:
        # Tiny batch: single tile. x/out refs are f32, so the native sublane
        # granularity is 8 rows (bf16 only appears as vreg *values* here).
        tile = _round_up(B, 8)
        return tile, tile, 1
    # Large batch: cap the tile so there are >= 2 grid steps (v7x: both TCs get
    # work), keep tiles a multiple of 256 (MXU aligned on all generations).
    cap = _round_up(pl.cdiv(B, 2), MXU_TILE)
    tile = min(_round_up(tile_m, MXU_TILE), cap)
    n_steps = pl.cdiv(B, tile)
    # Shrink the tile to minimize padded rows for awkward B (e.g. B just above
    # a tile boundary) while keeping the same step count.
    tile = _round_up(pl.cdiv(B, n_steps), MXU_TILE)
    return tile, tile * n_steps, n_steps


def dnn_kernel(x_ref, w1_ref, b1_ref, w2_ref, b2_ref, w3_ref, b3_ref, o_ref,
               *, compute_dtype, epilogue_dtype):
    """Fused 3-layer MLP on one (TILE_M, in_dim) batch tile.

    MXU operands are `compute_dtype` (bf16) with f32 accumulation. The bias+ReLU
    epilogue for layers 1/2 runs in `epilogue_dtype` (bf16 on v6e/v7x, f32 on
    v5e); the final bias add is f32 before the output cast.
    """
    # Layer 1: (TILE_M, 32) @ (32, 512), bias + ReLU.
    x = x_ref[...].astype(compute_dtype)
    h = jnp.dot(x, w1_ref[...], preferred_element_type=jnp.float32)
    h = jnp.maximum(h.astype(epilogue_dtype) + b1_ref[...], 0.0)
    # Layer 2: (TILE_M, 512) @ (512, 512), bias + ReLU.
    h = jnp.dot(h.astype(compute_dtype), w2_ref[...],
                preferred_element_type=jnp.float32)
    h = jnp.maximum(h.astype(epilogue_dtype) + b2_ref[...], 0.0)
    # Layer 3: (TILE_M, 512) @ (512, N_pad); lane-dense 128-wide unmasked store.
    out = jnp.dot(h.astype(compute_dtype), w3_ref[...],
                  preferred_element_type=jnp.float32)
    o_ref[...] = (out + b3_ref[...]).astype(o_ref.dtype)


def dnn_forward(x, kparams, output_dim, *, tile_m=512,
                compute_dtype=jnp.bfloat16, epilogue_dtype=None,
                out_dtype=jnp.float32):
    """x: (B, input_dim) float32; kparams from prepare_kernel_params.
    Returns (B, output_dim) in `out_dtype`."""
    if epilogue_dtype is None:
        epilogue_dtype = kparams["b1"].dtype
    w1, b1, w2, b2, w3, b3 = (
        kparams[k] for k in ("w1", "b1", "w2", "b2", "w3", "b3"))
    B, in_dim = x.shape
    assert w1.shape[0] == in_dim
    hidden = w1.shape[1]
    n_pad = w3.shape[1]

    tile_m_eff, b_pad, grid_m = _choose_tiling(B, tile_m)

    # Only a row pad (if any) -- no lane pad, no dtype cast in the wrapper.
    x_in = x if b_pad == B else jnp.pad(x, ((0, b_pad - B), (0, 0)))

    flops = 2 * b_pad * (in_dim * hidden + hidden * hidden + hidden * n_pad)
    bytes_accessed = (
        x_in.size * x_in.dtype.itemsize
        + sum(a.size * a.dtype.itemsize for a in (w1, b1, w2, b2, w3, b3))
        + b_pad * n_pad * jnp.dtype(out_dtype).itemsize)

    kernel = functools.partial(dnn_kernel, compute_dtype=compute_dtype,
                               epilogue_dtype=epilogue_dtype)

    out_p = pl.pallas_call(
        kernel,
        out_shape=jax.ShapeDtypeStruct((b_pad, n_pad), out_dtype),
        grid_spec=pltpu.PrefetchScalarGridSpec(
            num_scalar_prefetch=0,
            grid=(grid_m,),
            in_specs=[
                # Activations: pipelined over the batch grid. Last dim == full
                # array dim (32), so the (tile_m, 32) block is legal un-padded.
                pl.BlockSpec((tile_m_eff, in_dim), lambda i: (i, 0)),
                # Weights/biases: constant block index -> VMEM-resident across
                # all grid steps (no per-step re-DMA).
                pl.BlockSpec((in_dim, hidden), lambda i: (0, 0)),
                pl.BlockSpec((1, hidden), lambda i: (0, 0)),
                pl.BlockSpec((hidden, hidden), lambda i: (0, 0)),
                pl.BlockSpec((1, hidden), lambda i: (0, 0)),
                pl.BlockSpec((hidden, n_pad), lambda i: (0, 0)),
                pl.BlockSpec((1, n_pad), lambda i: (0, 0)),
            ],
            out_specs=pl.BlockSpec((tile_m_eff, n_pad), lambda i: (i, 0)),
        ),
        compiler_params=pltpu.CompilerParams(
            # Batch axis is embarrassingly parallel -> megacore sharding (v7x).
            dimension_semantics=("parallel",),
        ),
        cost_estimate=pl.CostEstimate(
            flops=flops, transcendentals=0, bytes_accessed=bytes_accessed),
    )(x_in, w1, b1, w2, b2, w3, b3)

    return out_p[:B, :output_dim]


def init_params(key, input_dim, output_dim, hidden=512):
    """Deterministic f32 init mimicking PyTorch nn.Linear default
    (U(-1/sqrt(fan_in), +1/sqrt(fan_in))). Weights stored as (in, out)."""
    dims = [(input_dim, hidden), (hidden, hidden), (hidden, output_dim)]
    params = {}
    for i, (fan_in, fan_out) in enumerate(dims, start=1):
        key, kw, kb = jax.random.split(key, 3)
        bound = 1.0 / jnp.sqrt(jnp.float32(fan_in))
        params[f"w{i}"] = jax.random.uniform(
            kw, (fan_in, fan_out), jnp.float32, -bound, bound)
        params[f"b{i}"] = jax.random.uniform(
            kb, (1, fan_out), jnp.float32, -bound, bound)
    return params


def prepare_kernel_params(params, input_dim, output_dim, *,
                          compute_dtype=jnp.bfloat16, epilogue_dtype=None):
    """Cast weights to the MXU compute dtype; pad only the output dim of
    w3/b3 to 128 lanes (lane-dense final store). b1/b2 are stored in the
    epilogue dtype (bf16 on v6e/v7x, f32 on v5e); b3 stays f32."""
    if epilogue_dtype is None:
        epilogue_dtype = _default_epilogue_dtype()
    n_pad = _round_up(output_dim, LANE)
    return {
        "w1": params["w1"].astype(compute_dtype),           # (32, 512), no K pad
        "b1": params["b1"].astype(epilogue_dtype),
        "w2": params["w2"].astype(compute_dtype),
        "b2": params["b2"].astype(epilogue_dtype),
        "w3": jnp.pad(params["w3"],
                      ((0, 0), (0, n_pad - output_dim))).astype(compute_dtype),
        "b3": jnp.pad(params["b3"],
                      ((0, 0), (0, n_pad - output_dim))).astype(jnp.float32),
    }


def dnn_reference(x, params):
    """Pure-JAX f32 reference matching the PyTorch module semantics."""
    h = jnp.maximum(x @ params["w1"] + params["b1"], 0.0)
    h = jnp.maximum(h @ params["w2"] + params["b2"], 0.0)
    return h @ params["w3"] + params["b3"]


if __name__ == "__main__":
    key = jax.random.PRNGKey(0)
    input_dim, output_dim = 32, 16

    params = init_params(key, input_dim, output_dim)
    kparams = prepare_kernel_params(params, input_dim, output_dim)

    ok = True
    # (1) tiny batch (single-tile path), (2) awkward large batch (multi-step
    #     grid, row padding, v7x two-core split).
    for batch in (8, 777):
        key, kx = jax.random.split(key)
        x = jax.random.normal(kx, (batch, input_dim), jnp.float32)

        out = dnn_forward(x, kparams, output_dim)
        out = jax.block_until_ready(out)

        ref = dnn_reference(x, params)
        assert out.shape == (batch, output_dim)
        # bf16 MXU operands (and bf16 epilogue on v6e/v7x) with f32
        # accumulation -> ~1e-2 relative vs the f32 reference.
        err = float(jnp.max(jnp.abs(out - ref)))
        ok = ok and bool(jnp.allclose(out, ref, atol=7.5e-2, rtol=7.5e-2))
        assert ok, (batch, err)

    print("KERNEL_OK")
</pallas_src>

<mosaic_0001>
module attributes {stable_mosaic.version = 11 : i64} {
  func.func @dnn_kernel(%arg0: i32, %arg1: memref<8x32xf32, #tpu.memory_space<vmem>>, %arg2: memref<32x512xbf16, #tpu.memory_space<vmem>>, %arg3: memref<1x512xbf16, #tpu.memory_space<vmem>>, %arg4: memref<512x512xbf16, #tpu.memory_space<vmem>>, %arg5: memref<1x512xbf16, #tpu.memory_space<vmem>>, %arg6: memref<512x128xbf16, #tpu.memory_space<vmem>>, %arg7: memref<1x128xf32, #tpu.memory_space<vmem>>, %arg8: memref<8x128xf32, #tpu.memory_space<vmem>>) attributes {dimension_semantics = [#tpu.dimension_semantics<parallel>], iteration_bounds = array<i64: 1>, scalar_prefetch = 0 : i64, scratch_operands = 0 : i64, tpu.core_type = #tpu.core_type<tc>, window_params = [{transform_indices = @transform_0, window_bounds = array<i64: 8, 32>}, {pipeline_mode = #tpu.pipeline_mode<synchronous>, transform_indices = @transform_1, window_bounds = array<i64: 32, 512>}, {pipeline_mode = #tpu.pipeline_mode<synchronous>, transform_indices = @transform_2, window_bounds = array<i64: 1, 512>}, {pipeline_mode = #tpu.pipeline_mode<synchronous>, transform_indices = @transform_3, window_bounds = array<i64: 512, 512>}, {pipeline_mode = #tpu.pipeline_mode<synchronous>, transform_indices = @transform_4, window_bounds = array<i64: 1, 512>}, {pipeline_mode = #tpu.pipeline_mode<synchronous>, transform_indices = @transform_5, window_bounds = array<i64: 512, 128>}, {pipeline_mode = #tpu.pipeline_mode<synchronous>, transform_indices = @transform_6, window_bounds = array<i64: 1, 128>}, {transform_indices = @transform_7, window_bounds = array<i64: 8, 128>}]} {
    %c0 = arith.constant 0 : index
    %c0_0 = arith.constant 0 : index
    %0 = vector.load %arg1[%c0, %c0_0] : memref<8x32xf32, #tpu.memory_space<vmem>>, vector<8x32xf32>
    %1 = arith.truncf %0 : vector<8x32xf32> to vector<8x32xbf16>
    %c0_1 = arith.constant 0 : index
    %c0_2 = arith.constant 0 : index
    %2 = vector.load %arg2[%c0_1, %c0_2] : memref<32x512xbf16, #tpu.memory_space<vmem>>, vector<32x512xbf16>
    %cst = arith.constant dense<0.000000e+00> : vector<8x512xf32>
    %3 = tpu.matmul %1, %2, %cst {dimension_numbers = #tpu.dot_dimension_numbers<[1], [0], [0], [1], [0, 0, 1, 1], [], []>} : vector<8x32xbf16>, vector<32x512xbf16>, vector<8x512xf32> -> vector<8x512xf32>
    %4 = arith.truncf %3 : vector<8x512xf32> to vector<8x512xbf16>
    %c0_3 = arith.constant 0 : index
    %c0_4 = arith.constant 0 : index
    %5 = vector.load %arg3[%c0_3, %c0_4] : memref<1x512xbf16, #tpu.memory_space<vmem>>, vector<1x512xbf16>
    %6 = vector.broadcast %5 : vector<1x512xbf16> to vector<8x512xbf16>
    %7 = arith.addf %4, %6 : vector<8x512xbf16>
    %cst_5 = arith.constant 0.000000e+00 : bf16
    %8 = vector.broadcast %cst_5 : bf16 to vector<8x512xbf16>
    %9 = arith.maximumf %7, %8 : vector<8x512xbf16>
    %c0_6 = arith.constant 0 : index
    %c0_7 = arith.constant 0 : index
    %10 = vector.load %arg4[%c0_6, %c0_7] : memref<512x512xbf16, #tpu.memory_space<vmem>>, vector<512x512xbf16>
    %cst_8 = arith.constant dense<0.000000e+00> : vector<8x512xf32>
    %11 = tpu.matmul %9, %10, %cst_8 {dimension_numbers = #tpu.dot_dimension_numbers<[1], [0], [0], [1], [0, 0, 1, 1], [], []>} : vector<8x512xbf16>, vector<512x512xbf16>, vector<8x512xf32> -> vector<8x512xf32>
    %12 = arith.truncf %11 : vector<8x512xf32> to vector<8x512xbf16>
    %c0_9 = arith.constant 0 : index
    %c0_10 = arith.constant 0 : index
    %13 = vector.load %arg5[%c0_9, %c0_10] : memref<1x512xbf16, #tpu.memory_space<vmem>>, vector<1x512xbf16>
    %14 = vector.broadcast %13 : vector<1x512xbf16> to vector<8x512xbf16>
    %15 = arith.addf %12, %14 : vector<8x512xbf16>
    %cst_11 = arith.constant 0.000000e+00 : bf16
    %16 = vector.broadcast %cst_11 : bf16 to vector<8x512xbf16>
    %17 = arith.maximumf %15, %16 : vector<8x512xbf16>
    %c0_12 = arith.constant 0 : index
    %c0_13 = arith.constant 0 : index
    %18 = vector.load %arg6[%c0_12, %c0_13] : memref<512x128xbf16, #tpu.memory_space<vmem>>, vector<512x128xbf16>
    %cst_14 = arith.constant dense<0.000000e+00> : vector<8x128xf32>
    %19 = tpu.matmul %17, %18, %cst_14 {dimension_numbers = #tpu.dot_dimension_numbers<[1], [0], [0], [1], [0, 0, 1, 1], [], []>} : vector<8x512xbf16>, vector<512x128xbf16>, vector<8x128xf32> -> vector<8x128xf32>
    %c0_15 = arith.constant 0 : index
    %c0_16 = arith.constant 0 : index
    %20 = vector.load %arg7[%c0_15, %c0_16] : memref<1x128xf32, #tpu.memory_space<vmem>>, vector<1x128xf32>
    %21 = vector.broadcast %20 : vector<1x128xf32> to vector<8x128xf32>
    %22 = arith.addf %19, %21 : vector<8x128xf32>
    %c0_17 = arith.constant 0 : index
    %c0_18 = arith.constant 0 : index
    %23 = vector.load %arg8[%c0_17, %c0_18] : memref<8x128xf32, #tpu.memory_space<vmem>>, vector<8x128xf32>
    tpu.vector_store %arg8[%c0_17, %c0_18], %22 {strides = array<i32>} : memref<8x128xf32, #tpu.memory_space<vmem>>, vector<8x128xf32>,
    return
  }
  func.func @transform_0(%arg0: i32) -> (i32, i32) {
    %c0_i32 = arith.constant 0 : i32
    %c0_i32_0 = arith.constant 0 : i32
    return %arg0, %c0_i32 : i32, i32
  }
  func.func @transform_1(%arg0: i32) -> (i32, i32) {
    %c0_i32 = arith.constant 0 : i32
    %c0_i32_0 = arith.constant 0 : i32
    %c0_i32_1 = arith.constant 0 : i32
    return %c0_i32, %c0_i32_0 : i32, i32
  }
  func.func @transform_2(%arg0: i32) -> (i32, i32) {
    %c0_i32 = arith.constant 0 : i32
    %c0_i32_0 = arith.constant 0 : i32
    %c0_i32_1 = arith.constant 0 : i32
    return %c0_i32, %c0_i32_0 : i32, i32
  }
  func.func @transform_3(%arg0: i32) -> (i32, i32) {
    %c0_i32 = arith.constant 0 : i32
    %c0_i32_0 = arith.constant 0 : i32
    %c0_i32_1 = arith.constant 0 : i32
    return %c0_i32, %c0_i32_0 : i32, i32
  }
  func.func @transform_4(%arg0: i32) -> (i32, i32) {
    %c0_i32 = arith.constant 0 : i32
    %c0_i32_0 = arith.constant 0 : i32
    %c0_i32_1 = arith.constant 0 : i32
    return %c0_i32, %c0_i32_0 : i32, i32
  }
  func.func @transform_5(%arg0: i32) -> (i32, i32) {
    %c0_i32 = arith.constant 0 : i32
    %c0_i32_0 = arith.constant 0 : i32
    %c0_i32_1 = arith.constant 0 : i32
    return %c0_i32, %c0_i32_0 : i32, i32
  }
  func.func @transform_6(%arg0: i32) -> (i32, i32) {
    %c0_i32 = arith.constant 0 : i32
    %c0_i32_0 = arith.constant 0 : i32
    %c0_i32_1 = arith.constant 0 : i32
    return %c0_i32, %c0_i32_0 : i32, i32
  }
  func.func @transform_7(%arg0: i32) -> (i32, i32) {
    %c0_i32 = arith.constant 0 : i32
    %c0_i32_0 = arith.constant 0 : i32
    return %arg0, %c0_i32 : i32, i32
  }
}

</mosaic_0001>

<llo_original>
// kernel: tpu_custom_call.1
$region0: #{tpu_custom_call.1}
  #allocation0 [shape = 'u32[]', space=smem, size = 0x4, offset = 0x4, fixed_abs, tag = 'smem constant byte address 0x4 - core index']
  #allocation1 [shape = 'u32[72,128]{1,0:T(1,128)}', space=vmem, size = 0x9000, scoped, tag = 'internal scratch']
  %s0 = inlined_call_operand.hbm [shape: f32[8,32], index: 0, kind: input, shape index: {}]
  %s1 = inlined_call_operand.hbm [shape: bf16[32,512], index: 1, kind: input, shape index: {}]
  %s2 = inlined_call_operand.hbm [shape: bf16[1,512], index: 2, kind: input, shape index: {}]
  %s3 = inlined_call_operand.hbm [shape: bf16[512,512], index: 3, kind: input, shape index: {}]
  %s4 = inlined_call_operand.hbm [shape: bf16[1,512], index: 4, kind: input, shape index: {}]
  %s5 = inlined_call_operand.hbm [shape: bf16[512,128], index: 5, kind: input, shape index: {}]
  %s6 = inlined_call_operand.vmem [shape: f32[1,128], index: 6, kind: input, shape index: {}]
  %s7 = inlined_call_operand.hbm [shape: f32[8,128], index: 7, kind: output, shape index: {}]
  %s8 = sld [smem:[#allocation0]]
  $region62: #{tpu_custom_call.1} parent=0
    _
  %s10 = ssub.s32 1, %s8
  %s11 = scalar_select 0, %s10, %s8
  $region1: #{tpu_custom_call.1} parent=0
    #allocation2 [shape = 'u8[4096]{0}', space=vmem, size = 0x1000, scoped, tag = 'input window, operand 0, single buffered']
    #allocation3 [shape = 's32[1]{0}', space=sflag, size = 0x4, scoped, tag = 'scoped memory for tpu_custom_call.1']
    #allocation4 [shape = 's32[1]{0}', space=sflag, size = 0x4, scoped, tag = 'scoped memory for tpu_custom_call.1']
    #allocation5 [shape = 'u8[32768]{0}', space=vmem, size = 0x8000, scoped, tag = 'input window, operand 1, single buffered']
    #allocation6 [shape = 's32[1]{0}', space=sflag, size = 0x4, scoped, tag = 'scoped memory for tpu_custom_call.1']
    #allocation7 [shape = 'u8[2048]{0}', space=vmem, size = 0x800, scoped, tag = 'input window, operand 2, single buffered']
    #allocation8 [shape = 'u8[524288]{0}', space=vmem, size = 0x80000, scoped, tag = 'input window, operand 3, single buffered']
    #allocation9 [shape = 's32[1]{0}', space=sflag, size = 0x4, scoped, tag = 'scoped memory for tpu_custom_call.1']
    #allocation10 [shape = 'u8[2048]{0}', space=vmem, size = 0x800, scoped, tag = 'input window, operand 4, single buffered']
    #allocation11 [shape = 'u8[131072]{0}', space=vmem, size = 0x20000, scoped, tag = 'input window, operand 5, single buffered']
    #allocation12 [shape = 's32[1]{0}', space=sflag, size = 0x4, scoped, tag = 'scoped memory for tpu_custom_call.1']
    #allocation13 [shape = 'u8[4096]{0}', space=vmem, size = 0x1000, scoped, tag = 'output window, operand 0, single buffered']
    %12 = vsyncpa [#allocation3], 0
    %13 = vsyncpa [#allocation6], 0
    %14 = vsyncpa [#allocation9], 0
    %15 = vsyncpa [#allocation12], 0
    %16 = vsyncpa [#allocation4], 0
    // Predicated region
    $region2: #{tpu_custom_call.1} parent=1 // pred_check
      _
    $region3: #{tpu_custom_call.1} parent=1 // pred_check_branch
      %18 = sbr.rel (0) target = $region5
    $region4: #{tpu_custom_call.1} parent=1 // pred_region
      %20 = vsyncadd [#allocation3], 0
      %s22 = sshll.u32 %s0, 4
      %s23 = int_to_ptr.hbm [resolvable:$true] %s22
      %s24 = sshll.u32 [#allocation2], 4
      %s25 = int_to_ptr.vmem [resolvable:$true] %s24
      %27 = dma.hbm_to_vmem [thread:$0]  %s23, 128, %s25, [#allocation3]
    $region5: #{tpu_custom_call.1} parent=1 // pred_fallthru
      _
    // Predicated region
    $region6: #{tpu_custom_call.1} parent=1 // pred_check
      _
    $region7: #{tpu_custom_call.1} parent=1 // pred_check_branch
      %29 = sbr.rel (0) target = $region9
    $region8: #{tpu_custom_call.1} parent=1 // pred_region
      %31 = vsyncadd [#allocation6], 0
      %s32 = sshll.u32 %s1, 4
      %s33 = int_to_ptr.hbm [resolvable:$true] %s32
      %s34 = sshll.u32 [#allocation5], 4
      %s35 = int_to_ptr.vmem [resolvable:$true] %s34
      %40 = dma.hbm_to_vmem [thread:$0]  %s33, 1024, %s35, [#allocation6], 256, 256, 16
    $region9: #{tpu_custom_call.1} parent=1 // pred_fallthru
      _
    // Predicated region
    $region10: #{tpu_custom_call.1} parent=1 // pred_check
      _
    $region11: #{tpu_custom_call.1} parent=1 // pred_check_branch
      %42 = sbr.rel (0) target = $region13
    $region12: #{tpu_custom_call.1} parent=1 // pred_region
      %44 = vsyncadd [#allocation6], 0
      %s46 = sshll.u32 %s2, 4
      %s47 = int_to_ptr.hbm [resolvable:$true] %s46
      %s48 = sshll.u32 [#allocation7], 4
      %s49 = int_to_ptr.vmem [resolvable:$true] %s48
      %51 = dma.hbm_to_vmem [thread:$0]  %s47, 64, %s49, [#allocation6]
    $region13: #{tpu_custom_call.1} parent=1 // pred_fallthru
      _
    // Predicated region
    $region14: #{tpu_custom_call.1} parent=1 // pred_check
      _
    $region15: #{tpu_custom_call.1} parent=1 // pred_check_branch
      %53 = sbr.rel (0) target = $region17
    $region16: #{tpu_custom_call.1} parent=1 // pred_region
      %55 = vsyncadd [#allocation9], 0
      %s56 = sshll.u32 %s3, 4
      %s57 = int_to_ptr.hbm [resolvable:$true] %s56
      %s58 = sshll.u32 [#allocation8], 4
      %s59 = int_to_ptr.vmem [resolvable:$true] %s58
      %64 = dma.hbm_to_vmem [thread:$0]  %s57, 16384, %s59, [#allocation9], 256, 256, 16
    $region17: #{tpu_custom_call.1} parent=1 // pred_fallthru
      _
    // Predicated region
    $region18: #{tpu_custom_call.1} parent=1 // pred_check
      _
    $region19: #{tpu_custom_call.1} parent=1 // pred_check_branch
      %66 = sbr.rel (0) target = $region21
    $region20: #{tpu_custom_call.1} parent=1 // pred_region
      %68 = vsyncadd [#allocation9], 0
      %s70 = sshll.u32 %s4, 4
      %s71 = int_to_ptr.hbm [resolvable:$true] %s70
      %s72 = sshll.u32 [#allocation10], 4
      %s73 = int_to_ptr.vmem [resolvable:$true] %s72
      %75 = dma.hbm_to_vmem [thread:$0]  %s71, 64, %s73, [#allocation9]
    $region21: #{tpu_custom_call.1} parent=1 // pred_fallthru
      _
    // Predicated region
    $region22: #{tpu_custom_call.1} parent=1 // pred_check
      _
    $region23: #{tpu_custom_call.1} parent=1 // pred_check_branch
      %77 = sbr.rel (0) target = $region25
    $region24: #{tpu_custom_call.1} parent=1 // pred_region
      %79 = vsyncadd [#allocation12], 0
      %s80 = sshll.u32 %s5, 4
      %s81 = int_to_ptr.hbm [resolvable:$true] %s80
      %s82 = sshll.u32 [#allocation11], 4
      %s83 = int_to_ptr.vmem [resolvable:$true] %s82
      %88 = dma.hbm_to_vmem [thread:$0]  %s81, 4096, %s83, [#allocation12], 64, 64, 4
    $region25: #{tpu_custom_call.1} parent=1 // pred_fallthru
      _
    // Predicated region
    $region26: #{tpu_custom_call.1} parent=1 // pred_check
      _
    $region27: #{tpu_custom_call.1} parent=1 // pred_check_branch
      %90 = sbr.rel (0) target = $region29
    $region28: #{tpu_custom_call.1} parent=1 // pred_region
      _
    $region29: #{tpu_custom_call.1} parent=1 // pred_fallthru
      _
    // Predicated region
    $region30: #{tpu_custom_call.1} parent=1 // pred_check
      _
    $region31: #{tpu_custom_call.1} parent=1 // pred_check_branch
      %92 = sbr.rel (0) target = $region33
    $region32: #{tpu_custom_call.1} parent=1 // pred_region
      %94 = dma.done [#allocation3], 128
    $region33: #{tpu_custom_call.1} parent=1 // pred_fallthru
      _
    // Predicated region
    $region34: #{tpu_custom_call.1} parent=1 // pred_check
      _
    $region35: #{tpu_custom_call.1} parent=1 // pred_check_branch
      %96 = sbr.rel (0) target = $region37
    $region36: #{tpu_custom_call.1} parent=1 // pred_region
      %98 = dma.done [#allocation6], 1024
    $region37: #{tpu_custom_call.1} parent=1 // pred_fallthru
      _
    // Predicated region
    $region38: #{tpu_custom_call.1} parent=1 // pred_check
      _
    $region39: #{tpu_custom_call.1} parent=1 // pred_check_branch
      %100 = sbr.rel (0) target = $region41
    $region40: #{tpu_custom_call.1} parent=1 // pred_region
      %102 = dma.done [#allocation6], 64
    $region41: #{tpu_custom_call.1} parent=1 // pred_fallthru
      _
    // Predicated region
    $region42: #{tpu_custom_call.1} parent=1 // pred_check
      _
    $region43: #{tpu_custom_call.1} parent=1 // pred_check_branch
      %104 = sbr.rel (0) target = $region45
    $region44: #{tpu_custom_call.1} parent=1 // pred_region
      %106 = dma.done [#allocation9], 16384
    $region45: #{tpu_custom_call.1} parent=1 // pred_fallthru
      _
    // Predicated region
    $region46: #{tpu_custom_call.1} parent=1 // pred_check
      _
    $region47: #{tpu_custom_call.1} parent=1 // pred_check_branch
      %108 = sbr.rel (0) target = $region49
    $region48: #{tpu_custom_call.1} parent=1 // pred_region
      %110 = dma.done [#allocation9], 64
    $region49: #{tpu_custom_call.1} parent=1 // pred_fallthru
      _
    // Predicated region
    $region50: #{tpu_custom_call.1} parent=1 // pred_check
      _
    $region51: #{tpu_custom_call.1} parent=1 // pred_check_branch
      %112 = sbr.rel (0) target = $region53
    $region52: #{tpu_custom_call.1} parent=1 // pred_region
      %114 = dma.done [#allocation12], 4096
    $region53: #{tpu_custom_call.1} parent=1 // pred_fallthru
      _
    %v116 = vld [vmem:[#allocation2] sm:$0xff]
    %v117 = vpack.c.bf16 %v116, %v116
    %v118 = vld [vmem:[#allocation5] sm:$0xff]
    %v119 = vld [vmem:[#allocation5 + $0x8] sm:$0xff]
    %v120 = vld [vmem:[#allocation5 + $0x10] sm:$0xff]
    %v121 = vld [vmem:[#allocation5 + $0x18] sm:$0xff]
    %v122 = vld [vmem:[#allocation5 + $0x20] sm:$0xff]
    %v123 = vld [vmem:[#allocation5 + $0x28] sm:$0xff]
    %v124 = vld [vmem:[#allocation5 + $0x30] sm:$0xff]
    %v125 = vld [vmem:[#allocation5 + $0x38] sm:$0xff]
    %v134 = vunpack.c.l.b16 %v118
    %v135 = vunpack.c.h.b16 %v118
    %v136 = vunpack.c.l.b16 %v119
    %v137 = vunpack.c.h.b16 %v119
    %v138 = vunpack.c.l.b16 %v120
    %v139 = vunpack.c.h.b16 %v120
    %v140 = vunpack.c.l.b16 %v121
    %v141 = vunpack.c.h.b16 %v121
    %v142 = vunpack.c.l.b16 %v122
    %v143 = vunpack.c.h.b16 %v122
    %v144 = vunpack.c.l.b16 %v123
    %v145 = vunpack.c.h.b16 %v123
    %v146 = vunpack.c.l.b16 %v124
    %v147 = vunpack.c.h.b16 %v124
    %v148 = vunpack.c.l.b16 %v125
    %v149 = vunpack.c.h.b16 %v125
    %v150 = vpack.c.b16 %v138, %v134
    %v151 = vpack.c.b16 %v139, %v135
    %v152 = vpack.c.b16 %v140, %v136
    %v153 = vpack.c.b16 %v141, %v137
    %v154 = vpack.c.b16 %v146, %v142
    %v155 = vpack.c.b16 %v147, %v143
    %v156 = vpack.c.b16 %v148, %v144
    %v157 = vpack.c.b16 %v149, %v145
    %vm166 = vcmask 261120
    %v168 = vsel %vm166, %v117, 0
    %170 = vmatpush.bf16.msra.mxu0 0
    %171 = vmatpush.bf16.msra.mxu0 0
    %172 = vmatpush.bf16.msra.mxu0 0
    %173 = vmatpush.bf16.msra.mxu0 0
    %174 = vmatpush.bf16.msra.mxu0 0
    %175 = vmatpush.bf16.msra.mxu0 0
    %176 = vmatpush.bf16.msra.mxu0 %v154
    %177 = vmatpush.bf16.msra.mxu0 %v150
    %178 = vmatmul.bf16.gmra.mxu0 %v168
    %v179 = vpop.f32.mrf.mxu0
    %v180 = vadd.f32 0.0, %v179
    %v181 = vpop.f32.mrf.mxu0
    %182 = vdwg.mxu0
    %183 = vmatpush.bf16.msra.mxu0 0
    %184 = vmatpush.bf16.msra.mxu0 0
    %185 = vmatpush.bf16.msra.mxu0 0
    %186 = vmatpush.bf16.msra.mxu0 0
    %187 = vmatpush.bf16.msra.mxu0 0
    %188 = vmatpush.bf16.msra.mxu0 0
    %189 = vmatpush.bf16.msra.mxu0 %v155
    %190 = vmatpush.bf16.msra.mxu0 %v151
    %191 = vmatmul.bf16.gmra.mxu0 %v168
    %v192 = vpop.f32.mrf.mxu0
    %v193 = vadd.f32 0.0, %v192
    %v194 = vpop.f32.mrf.mxu0
    %195 = vdwg.mxu0
    %196 = vmatpush.bf16.msra.mxu0 0
    %197 = vmatpush.bf16.msra.mxu0 0
    %198 = vmatpush.bf16.msra.mxu0 0
    %199 = vmatpush.bf16.msra.mxu0 0
    %200 = vmatpush.bf16.msra.mxu0 0
    %201 = vmatpush.bf16.msra.mxu0 0
    %202 = vmatpush.bf16.msra.mxu0 %v156
    %203 = vmatpush.bf16.msra.mxu0 %v152
    %204 = vmatmul.bf16.gmra.mxu0 %v168
    %v205 = vpop.f32.mrf.mxu0
    %v206 = vadd.f32 0.0, %v205
    %v207 = vpop.f32.mrf.mxu0
    %208 = vdwg.mxu0
    %209 = vmatpush.bf16.msra.mxu0 0
    %210 = vmatpush.bf16.msra.mxu0 0
    %211 = vmatpush.bf16.msra.mxu0 0
    %212 = vmatpush.bf16.msra.mxu0 0
    %213 = vmatpush.bf16.msra.mxu0 0
    %214 = vmatpush.bf16.msra.mxu0 0
    %215 = vmatpush.bf16.msra.mxu0 %v157
    %216 = vmatpush.bf16.msra.mxu0 %v153
    %217 = vmatmul.bf16.gmra.mxu0 %v168
    %v218 = vpop.f32.mrf.mxu0
    %v219 = vadd.f32 0.0, %v218
    %v220 = vpop.f32.mrf.mxu0
    %221 = vdwg.mxu0
    %v222 = vpack.c.bf16 %v193, %v180
    %v223 = vpack.c.bf16 %v219, %v206
    %v224 = vld [vmem:[#allocation7] sm:$0xf]
    %226 = vst [vmem:[#allocation1] ss:$9 sm:$0xff] %v224
    %v227 = vld [vmem:[#allocation1] sm:$0xff]
    %v228 = vld [vmem:[#allocation1 + $0x9] sm:$0xff]
    %v229 = vld [vmem:[#allocation1 + $0x12] sm:$0xff]
    %v230 = vld [vmem:[#allocation1 + $0x1b] sm:$0xff]
    %v231 = vpack.i.b16 %v227, %v227
    %v233 = vperm.slane %v231, 0
    %v234 = vpack.i.b16 %v228, %v228
    %v236 = vperm.slane %v234, 0
    %v237 = vpack.i.b16 %v229, %v229
    %v239 = vperm.slane %v237, 0
    %v240 = vpack.i.b16 %v230, %v230
    %v242 = vperm.slane %v240, 0
    %v243 = vunpack.c.l.bf16 %v222
    %v244 = vunpack.c.h.bf16 %v222
    %v245 = vunpack.c.l.bf16 %v223
    %v246 = vunpack.c.h.bf16 %v223
    %v247 = vunpack.c.l.bf16 %v233
    %v248 = vunpack.c.l.bf16 %v236
    %v249 = vunpack.c.l.bf16 %v239
    %v250 = vunpack.c.l.bf16 %v242
    %v251 = vadd.f32 %v243, %v247
    %v252 = vadd.f32 %v244, %v248
    %v253 = vadd.f32 %v245, %v249
    %v254 = vadd.f32 %v246, %v250
    %v255 = vpack.c.bf16 %v252, %v251
    %v256 = vpack.c.bf16 %v254, %v253
    %v257 = vunpack.c.l.bf16 %v255
    %v258 = vunpack.c.h.bf16 %v255
    %v259 = vunpack.c.l.bf16 %v256
    %v260 = vunpack.c.h.bf16 %v256
    %v261 = vmax.f32 %v257, 0.0
    %v262 = vmax.f32 %v258, 0.0
    %v263 = vmax.f32 %v259, 0.0
    %v264 = vmax.f32 %v260, 0.0
    %v265 = vpack.c.bf16 %v261, %v261
    %v266 = vpack.c.bf16 %v262, %v262
    %v267 = vpack.c.bf16 %v263, %v263
    %v268 = vpack.c.bf16 %v264, %v264
    %v269 = vld [vmem:[#allocation8] sm:$0xff]
    %v270 = vld [vmem:[#allocation8 + $0x8] sm:$0xff]
    %v271 = vld [vmem:[#allocation8 + $0x10] sm:$0xff]
    %v272 = vld [vmem:[#allocation8 + $0x18] sm:$0xff]
    %v273 = vld [vmem:[#allocation8 + $0x20] sm:$0xff]
    %v274 = vld [vmem:[#allocation8 + $0x28] sm:$0xff]
    %v275 = vld [vmem:[#allocation8 + $0x30] sm:$0xff]
    %v276 = vld [vmem:[#allocation8 + $0x38] sm:$0xff]
    %v277 = vld [vmem:[#allocation8 + $0x40] sm:$0xff]
    %v278 = vld [vmem:[#allocation8 + $0x48] sm:$0xff]
    %v279 = vld [vmem:[#allocation8 + $0x50] sm:$0xff]
    %v280 = vld [vmem:[#allocation8 + $0x58] sm:$0xff]
    %v281 = vld [vmem:[#allocation8 + $0x60] sm:$0xff]
    %v282 = vld [vmem:[#allocation8 + $0x68] sm:$0xff]
    %v283 = vld [vmem:[#allocation8 + $0x70] sm:$0xff]
    %v284 = vld [vmem:[#allocation8 + $0x78] sm:$0xff]
    %v285 = vld [vmem:[#allocation8 + $0x80] sm:$0xff]
    %v286 = vld [vmem:[#allocation8 + $0x88] sm:$0xff]
    %v287 = vld [vmem:[#allocation8 + $0x90] sm:$0xff]
    %v288 = vld [vmem:[#allocation8 + $0x98] sm:$0xff]
    %v289 = vld [vmem:[#allocation8 + $0xa0] sm:$0xff]
    %v290 = vld [vmem:[#allocation8 + $0xa8] sm:$0xff]
    %v291 = vld [vmem:[#allocation8 + $0xb0] sm:$0xff]
    %v292 = vld [vmem:[#allocation8 + $0xb8] sm:$0xff]
    %v293 = vld [vmem:[#allocation8 + $0xc0] sm:$0xff]
    %v294 = vld [vmem:[#allocation8 + $0xc8] sm:$0xff]
    %v295 = vld [vmem:[#allocation8 + $0xd0] sm:$0xff]
    %v296 = vld [vmem:[#allocation8 + $0xd8] sm:$0xff]
    %v297 = vld [vmem:[#allocation8 + $0xe0] sm:$0xff]
    %v298 = vld [vmem:[#allocation8 + $0xe8] sm:$0xff]
    %v299 = vld [vmem:[#allocation8 + $0xf0] sm:$0xff]
    %v300 = vld [vmem:[#allocation8 + $0xf8] sm:$0xff]
    %v301 = vld [vmem:[#allocation8 + $0x100] sm:$0xff]
    %v302 = vld [vmem:[#allocation8 + $0x108] sm:$0xff]
    %v303 = vld [vmem:[#allocation8 + $0x110] sm:$0xff]
    %v304 = vld [vmem:[#allocation8 + $0x118] sm:$0xff]
    %v305 = vld [vmem:[#allocation8 + $0x120] sm:$0xff]
    %v306 = vld [vmem:[#allocation8 + $0x128] sm:$0xff]
    %v307 = vld [vmem:[#allocation8 + $0x130] sm:$0xff]
    %v308 = vld [vmem:[#allocation8 + $0x138] sm:$0xff]
    %v309 = vld [vmem:[#allocation8 + $0x140] sm:$0xff]
    %v310 = vld [vmem:[#allocation8 + $0x148] sm:$0xff]
    %v311 = vld [vmem:[#allocation8 + $0x150] sm:$0xff]
    %v312 = vld [vmem:[#allocation8 + $0x158] sm:$0xff]
    %v313 = vld [vmem:[#allocation8 + $0x160] sm:$0xff]
    %v314 = vld [vmem:[#allocation8 + $0x168] sm:$0xff]
    %v315 = vld [vmem:[#allocation8 + $0x170] sm:$0xff]
    %v316 = vld [vmem:[#allocation8 + $0x178] sm:$0xff]
    %v317 = vld [vmem:[#allocation8 + $0x180] sm:$0xff]
    %v318 = vld [vmem:[#allocation8 + $0x188] sm:$0xff]
    %v319 = vld [vmem:[#allocation8 + $0x190] sm:$0xff]
    %v320 = vld [vmem:[#allocation8 + $0x198] sm:$0xff]
    %v321 = vld [vmem:[#allocation8 + $0x1a0] sm:$0xff]
    %v322 = vld [vmem:[#allocation8 + $0x1a8] sm:$0xff]
    %v323 = vld [vmem:[#allocation8 + $0x1b0] sm:$0xff]
    %v324 = vld [vmem:[#allocation8 + $0x1b8] sm:$0xff]
    %v325 = vld [vmem:[#allocation8 + $0x1c0] sm:$0xff]
    %v326 = vld [vmem:[#allocation8 + $0x1c8] sm:$0xff]
    %v327 = vld [vmem:[#allocation8 + $0x1d0] sm:$0xff]
    %v328 = vld [vmem:[#allocation8 + $0x1d8] sm:$0xff]
    %v329 = vld [vmem:[#allocation8 + $0x1e0] sm:$0xff]
    %v330 = vld [vmem:[#allocation8 + $0x1e8] sm:$0xff]
    %v331 = vld [vmem:[#allocation8 + $0x1f0] sm:$0xff]
    %v332 = vld [vmem:[#allocation8 + $0x1f8] sm:$0xff]
    %v333 = vld [vmem:[#allocation8 + $0x200] sm:$0xff]
    %v334 = vld [vmem:[#allocation8 + $0x208] sm:$0xff]
    %v335 = vld [vmem:[#allocation8 + $0x210] sm:$0xff]
    %v336 = vld [vmem:[#allocation8 + $0x218] sm:$0xff]
    %v337 = vld [vmem:[#allocation8 + $0x220] sm:$0xff]
    %v338 = vld [vmem:[#allocation8 + $0x228] sm:$0xff]
    %v339 = vld [vmem:[#allocation8 + $0x230] sm:$0xff]
    %v340 = vld [vmem:[#allocation8 + $0x238] sm:$0xff]
    %v341 = vld [vmem:[#allocation8 + $0x240] sm:$0xff]
    %v342 = vld [vmem:[#allocation8 + $0x248] sm:$0xff]
    %v343 = vld [vmem:[#allocation8 + $0x250] sm:$0xff]
    %v344 = vld [vmem:[#allocation8 + $0x258] sm:$0xff]
    %v345 = vld [vmem:[#allocation8 + $0x260] sm:$0xff]
    %v346 = vld [vmem:[#allocation8 + $0x268] sm:$0xff]
    %v347 = vld [vmem:[#allocation8 + $0x270] sm:$0xff]
    %v348 = vld [vmem:[#allocation8 + $0x278] sm:$0xff]
    %v349 = vld [vmem:[#allocation8 + $0x280] sm:$0xff]
    %v350 = vld [vmem:[#allocation8 + $0x288] sm:$0xff]
    %v351 = vld [vmem:[#allocation8 + $0x290] sm:$0xff]
    %v352 = vld [vmem:[#allocation8 + $0x298] sm:$0xff]
    %v353 = vld [vmem:[#allocation8 + $0x2a0] sm:$0xff]
    %v354 = vld [vmem:[#allocation8 + $0x2a8] sm:$0xff]
    %v355 = vld [vmem:[#allocation8 + $0x2b0] sm:$0xff]
    %v356 = vld [vmem:[#allocation8 + $0x2b8] sm:$0xff]
    %v357 = vld [vmem:[#allocation8 + $0x2c0] sm:$0xff]
    %v358 = vld [vmem:[#allocation8 + $0x2c8] sm:$0xff]
    %v359 = vld [vmem:[#allocation8 + $0x2d0] sm:$0xff]
    %v360 = vld [vmem:[#allocation8 + $0x2d8] sm:$0xff]
    %v361 = vld [vmem:[#allocation8 + $0x2e0] sm:$0xff]
    %v362 = vld [vmem:[#allocation8 + $0x2e8] sm:$0xff]
    %v363 = vld [vmem:[#allocation8 + $0x2f0] sm:$0xff]
    %v364 = vld [vmem:[#allocation8 + $0x2f8] sm:$0xff]
    %v365 = vld [vmem:[#allocation8 + $0x300] sm:$0xff]
    %v366 = vld [vmem:[#allocation8 + $0x308] sm:$0xff]
    %v367 = vld [vmem:[#allocation8 + $0x310] sm:$0xff]
    %v368 = vld [vmem:[#allocation8 + $0x318] sm:$0xff]
    %v369 = vld [vmem:[#allocation8 + $0x320] sm:$0xff]
    %v370 = vld [vmem:[#allocation8 + $0x328] sm:$0xff]
    %v371 = vld [vmem:[#allocation8 + $0x330] sm:$0xff]
    %v372 = vld [vmem:[#allocation8 + $0x338] sm:$0xff]
    %v373 = vld [vmem:[#allocation8 + $0x340] sm:$0xff]
    %v374 = vld [vmem:[#allocation8 + $0x348] sm:$0xff]
    %v375 = vld [vmem:[#allocation8 + $0x350] sm:$0xff]
    %v376 = vld [vmem:[#allocation8 + $0x358] sm:$0xff]
    %v377 = vld [vmem:[#allocation8 + $0x360] sm:$0xff]
    %v378 = vld [vmem:[#allocation8 + $0x368] sm:$0xff]
    %v379 = vld [vmem:[#allocation8 + $0x370] sm:$0xff]
    %v380 = vld [vmem:[#allocation8 + $0x378] sm:$0xff]
    %v381 = vld [vmem:[#allocation8 + $0x380] sm:$0xff]
    %v382 = vld [vmem:[#allocation8 + $0x388] sm:$0xff]
    %v383 = vld [vmem:[#allocation8 + $0x390] sm:$0xff]
    %v384 = vld [vmem:[#allocation8 + $0x398] sm:$0xff]
    %v385 = vld [vmem:[#allocation8 + $0x3a0] sm:$0xff]
    %v386 = vld [vmem:[#allocation8 + $0x3a8] sm:$0xff]
    %v387 = vld [vmem:[#allocation8 + $0x3b0] sm:$0xff]
    %v388 = vld [vmem:[#allocation8 + $0x3b8] sm:$0xff]
    %v389 = vld [vmem:[#allocation8 + $0x3c0] sm:$0xff]
    %v390 = vld [vmem:[#allocation8 + $0x3c8] sm:$0xff]
    %v391 = vld [vmem:[#allocation8 + $0x3d0] sm:$0xff]
    %v392 = vld [vmem:[#allocation8 + $0x3d8] sm:$0xff]
    %v393 = vld [vmem:[#allocation8 + $0x3e0] sm:$0xff]
    %v394 = vld [vmem:[#allocation8 + $0x3e8] sm:$0xff]
    %v395 = vld [vmem:[#allocation8 + $0x3f0] sm:$0xff]
    %v396 = vld [vmem:[#allocation8 + $0x3f8] sm:$0xff]
    %v525 = vunpack.c.l.b16 %v269
    %v526 = vunpack.c.h.b16 %v269
    %v527 = vunpack.c.l.b16 %v270
    %v528 = vunpack.c.h.b16 %v270
    %v529 = vunpack.c.l.b16 %v271
    %v530 = vunpack.c.h.b16 %v271
    %v531 = vunpack.c.l.b16 %v272
    %v532 = vunpack.c.h.b16 %v272
    %v533 = vunpack.c.l.b16 %v273
    %v534 = vunpack.c.h.b16 %v273
    %v535 = vunpack.c.l.b16 %v274
    %v536 = vunpack.c.h.b16 %v274
    %v537 = vunpack.c.l.b16 %v275
    %v538 = vunpack.c.h.b16 %v275
    %v539 = vunpack.c.l.b16 %v276
    %v540 = vunpack.c.h.b16 %v276
    %v541 = vunpack.c.l.b16 %v277
    %v542 = vunpack.c.h.b16 %v277
    %v543 = vunpack.c.l.b16 %v278
    %v544 = vunpack.c.h.b16 %v278
    %v545 = vunpack.c.l.b16 %v279
    %v546 = vunpack.c.h.b16 %v279
    %v547 = vunpack.c.l.b16 %v280
    %v548 = vunpack.c.h.b16 %v280
    %v549 = vunpack.c.l.b16 %v281
    %v550 = vunpack.c.h.b16 %v281
    %v551 = vunpack.c.l.b16 %v282
    %v552 = vunpack.c.h.b16 %v282
    %v553 = vunpack.c.l.b16 %v283
    %v554 = vunpack.c.h.b16 %v283
    %v555 = vunpack.c.l.b16 %v284
    %v556 = vunpack.c.h.b16 %v284
    %v557 = vunpack.c.l.b16 %v285
    %v558 = vunpack.c.h.b16 %v285
    %v559 = vunpack.c.l.b16 %v286
    %v560 = vunpack.c.h.b16 %v286
    %v561 = vunpack.c.l.b16 %v287
    %v562 = vunpack.c.h.b16 %v287
    %v563 = vunpack.c.l.b16 %v288
    %v564 = vunpack.c.h.b16 %v288
    %v565 = vunpack.c.l.b16 %v289
    %v566 = vunpack.c.h.b16 %v289
    %v567 = vunpack.c.l.b16 %v290
    %v568 = vunpack.c.h.b16 %v290
    %v569 = vunpack.c.l.b16 %v291
    %v570 = vunpack.c.h.b16 %v291
    %v571 = vunpack.c.l.b16 %v292
    %v572 = vunpack.c.h.b16 %v292
    %v573 = vunpack.c.l.b16 %v293
    %v574 = vunpack.c.h.b16 %v293
    %v575 = vunpack.c.l.b16 %v294
    %v576 = vunpack.c.h.b16 %v294
    %v577 = vunpack.c.l.b16 %v295
    %v578 = vunpack.c.h.b16 %v295
    %v579 = vunpack.c.l.b16 %v296
    %v580 = vunpack.c.h.b16 %v296
    %v581 = vunpack.c.l.b16 %v297
    %v582 = vunpack.c.h.b16 %v297
    %v583 = vunpack.c.l.b16 %v298
    %v584 = vunpack.c.h.b16 %v298
    %v585 = vunpack.c.l.b16 %v299
    %v586 = vunpack.c.h.b16 %v299
    %v587 = vunpack.c.l.b16 %v300
    %v588 = vunpack.c.h.b16 %v300
    %v589 = vunpack.c.l.b16 %v301
    %v590 = vunpack.c.h.b16 %v301
    %v591 = vunpack.c.l.b16 %v302
    %v592 = vunpack.c.h.b16 %v302
    %v593 = vunpack.c.l.b16 %v303
    %v594 = vunpack.c.h.b16 %v303
    %v595 = vunpack.c.l.b16 %v304
    %v596 = vunpack.c.h.b16 %v304
    %v597 = vunpack.c.l.b16 %v305
    %v598 = vunpack.c.h.b16 %v305
    %v599 = vunpack.c.l.b16 %v306
    %v600 = vunpack.c.h.b16 %v306
    %v601 = vunpack.c.l.b16 %v307
    %v602 = vunpack.c.h.b16 %v307
    %v603 = vunpack.c.l.b16 %v308
    %v604 = vunpack.c.h.b16 %v308
    %v605 = vunpack.c.l.b16 %v309
    %v606 = vunpack.c.h.b16 %v309
    %v607 = vunpack.c.l.b16 %v310
    %v608 = vunpack.c.h.b16 %v310
    %v609 = vunpack.c.l.b16 %v311
    %v610 = vunpack.c.h.b16 %v311
    %v611 = vunpack.c.l.b16 %v312
    %v612 = vunpack.c.h.b16 %v312
    %v613 = vunpack.c.l.b16 %v313
    %v614 = vunpack.c.h.b16 %v313
    %v615 = vunpack.c.l.b16 %v314
    %v616 = vunpack.c.h.b16 %v314
    %v617 = vunpack.c.l.b16 %v315
    %v618 = vunpack.c.h.b16 %v315
    %v619 = vunpack.c.l.b16 %v316
    %v620 = vunpack.c.h.b16 %v316
    %v621 = vunpack.c.l.b16 %v317
    %v622 = vunpack.c.h.b16 %v317
    %v623 = vunpack.c.l.b16 %v318
    %v624 = vunpack.c.h.b16 %v318
    %v625 = vunpack.c.l.b16 %v319
    %v626 = vunpack.c.h.b16 %v319
    %v627 = vunpack.c.l.b16 %v320
    %v628 = vunpack.c.h.b16 %v320
    %v629 = vunpack.c.l.b16 %v321
    %v630 = vunpack.c.h.b16 %v321
    %v631 = vunpack.c.l.b16 %v322
    %v632 = vunpack.c.h.b16 %v322
    %v633 = vunpack.c.l.b16 %v323
    %v634 = vunpack.c.h.b16 %v323
    %v635 = vunpack.c.l.b16 %v324
    %v636 = vunpack.c.h.b16 %v324
    %v637 = vunpack.c.l.b16 %v325
    %v638 = vunpack.c.h.b16 %v325
    %v639 = vunpack.c.l.b16 %v326
    %v640 = vunpack.c.h.b16 %v326
    %v641 = vunpack.c.l.b16 %v327
    %v642 = vunpack.c.h.b16 %v327
    %v643 = vunpack.c.l.b16 %v328
    %v644 = vunpack.c.h.b16 %v328
    %v645 = vunpack.c.l.b16 %v329
    %v646 = vunpack.c.h.b16 %v329
    %v647 = vunpack.c.l.b16 %v330
    %v648 = vunpack.c.h.b16 %v330
    %v649 = vunpack.c.l.b16 %v331
    %v650 = vunpack.c.h.b16 %v331
    %v651 = vunpack.c.l.b16 %v332
    %v652 = vunpack.c.h.b16 %v332
    %v653 = vunpack.c.l.b16 %v333
    %v654 = vunpack.c.h.b16 %v333
    %v655 = vunpack.c.l.b16 %v334
    %v656 = vunpack.c.h.b16 %v334
    %v657 = vunpack.c.l.b16 %v335
    %v658 = vunpack.c.h.b16 %v335
    %v659 = vunpack.c.l.b16 %v336
    %v660 = vunpack.c.h.b16 %v336
    %v661 = vunpack.c.l.b16 %v337
    %v662 = vunpack.c.h.b16 %v337
    %v663 = vunpack.c.l.b16 %v338
    %v664 = vunpack.c.h.b16 %v338
    %v665 = vunpack.c.l.b16 %v339
    %v666 = vunpack.c.h.b16 %v339
    %v667 = vunpack.c.l.b16 %v340
    %v668 = vunpack.c.h.b16 %v340
    %v669 = vunpack.c.l.b16 %v341
    %v670 = vunpack.c.h.b16 %v341
    %v671 = vunpack.c.l.b16 %v342
    %v672 = vunpack.c.h.b16 %v342
    %v673 = vunpack.c.l.b16 %v343
    %v674 = vunpack.c.h.b16 %v343
    %v675 = vunpack.c.l.b16 %v344
    %v676 = vunpack.c.h.b16 %v344
    %v677 = vunpack.c.l.b16 %v345
    %v678 = vunpack.c.h.b16 %v345
    %v679 = vunpack.c.l.b16 %v346
    %v680 = vunpack.c.h.b16 %v346
    %v681 = vunpack.c.l.b16 %v347
    %v682 = vunpack.c.h.b16 %v347
    %v683 = vunpack.c.l.b16 %v348
    %v684 = vunpack.c.h.b16 %v348
    %v685 = vunpack.c.l.b16 %v349
    %v686 = vunpack.c.h.b16 %v349
    %v687 = vunpack.c.l.b16 %v350
    %v688 = vunpack.c.h.b16 %v350
    %v689 = vunpack.c.l.b16 %v351
    %v690 = vunpack.c.h.b16 %v351
    %v691 = vunpack.c.l.b16 %v352
    %v692 = vunpack.c.h.b16 %v352
    %v693 = vunpack.c.l.b16 %v353
    %v694 = vunpack.c.h.b16 %v353
    %v695 = vunpack.c.l.b16 %v354
    %v696 = vunpack.c.h.b16 %v354
    %v697 = vunpack.c.l.b16 %v355
    %v698 = vunpack.c.h.b16 %v355
    %v699 = vunpack.c.l.b16 %v356
    %v700 = vunpack.c.h.b16 %v356
    %v701 = vunpack.c.l.b16 %v357
    %v702 = vunpack.c.h.b16 %v357
    %v703 = vunpack.c.l.b16 %v358
    %v704 = vunpack.c.h.b16 %v358
    %v705 = vunpack.c.l.b16 %v359
    %v706 = vunpack.c.h.b16 %v359
    %v707 = vunpack.c.l.b16 %v360
    %v708 = vunpack.c.h.b16 %v360
    %v709 = vunpack.c.l.b16 %v361
    %v710 = vunpack.c.h.b16 %v361
    %v711 = vunpack.c.l.b16 %v362
    %v712 = vunpack.c.h.b16 %v362
    %v713 = vunpack.c.l.b16 %v363
    %v714 = vunpack.c.h.b16 %v363
    %v715 = vunpack.c.l.b16 %v364
    %v716 = vunpack.c.h.b16 %v364
    %v717 = vunpack.c.l.b16 %v365
    %v718 = vunpack.c.h.b16 %v365
    %v719 = vunpack.c.l.b16 %v366
    %v720 = vunpack.c.h.b16 %v366
    %v721 = vunpack.c.l.b16 %v367
    %v722 = vunpack.c.h.b16 %v367
    %v723 = vunpack.c.l.b16 %v368
    %v724 = vunpack.c.h.b16 %v368
    %v725 = vunpack.c.l.b16 %v369
    %v726 = vunpack.c.h.b16 %v369
    %v727 = vunpack.c.l.b16 %v370
    %v728 = vunpack.c.h.b16 %v370
    %v729 = vunpack.c.l.b16 %v371
    %v730 = vunpack.c.h.b16 %v371
    %v731 = vunpack.c.l.b16 %v372
    %v732 = vunpack.c.h.b16 %v372
    %v733 = vunpack.c.l.b16 %v373
    %v734 = vunpack.c.h.b16 %v373
    %v735 = vunpack.c.l.b16 %v374
    %v736 = vunpack.c.h.b16 %v374
    %v737 = vunpack.c.l.b16 %v375
    %v738 = vunpack.c.h.b16 %v375
    %v739 = vunpack.c.l.b16 %v376
    %v740 = vunpack.c.h.b16 %v376
    %v741 = vunpack.c.l.b16 %v377
    %v742 = vunpack.c.h.b16 %v377
    %v743 = vunpack.c.l.b16 %v378
    %v744 = vunpack.c.h.b16 %v378
    %v745 = vunpack.c.l.b16 %v379
    %v746 = vunpack.c.h.b16 %v379
    %v747 = vunpack.c.l.b16 %v380
    %v748 = vunpack.c.h.b16 %v380
    %v749 = vunpack.c.l.b16 %v381
    %v750 = vunpack.c.h.b16 %v381
    %v751 = vunpack.c.l.b16 %v382
    %v752 = vunpack.c.h.b16 %v382
    %v753 = vunpack.c.l.b16 %v383
    %v754 = vunpack.c.h.b16 %v383
    %v755 = vunpack.c.l.b16 %v384
    %v756 = vunpack.c.h.b16 %v384
    %v757 = vunpack.c.l.b16 %v385
    %v758 = vunpack.c.h.b16 %v385
    %v759 = vunpack.c.l.b16 %v386
    %v760 = vunpack.c.h.b16 %v386
    %v761 = vunpack.c.l.b16 %v387
    %v762 = vunpack.c.h.b16 %v387
    %v763 = vunpack.c.l.b16 %v388
    %v764 = vunpack.c.h.b16 %v388
    %v765 = vunpack.c.l.b16 %v389
    %v766 = vunpack.c.h.b16 %v389
    %v767 = vunpack.c.l.b16 %v390
    %v768 = vunpack.c.h.b16 %v390
    %v769 = vunpack.c.l.b16 %v391
    %v770 = vunpack.c.h.b16 %v391
    %v771 = vunpack.c.l.b16 %v392
    %v772 = vunpack.c.h.b16 %v392
    %v773 = vunpack.c.l.b16 %v393
    %v774 = vunpack.c.h.b16 %v393
    %v775 = vunpack.c.l.b16 %v394
    %v776 = vunpack.c.h.b16 %v394
    %v777 = vunpack.c.l.b16 %v395
    %v778 = vunpack.c.h.b16 %v395
    %v779 = vunpack.c.l.b16 %v396
    %v780 = vunpack.c.h.b16 %v396
    %v781 = vpack.c.b16 %v529, %v525
    %v782 = vpack.c.b16 %v530, %v526
    %v783 = vpack.c.b16 %v531, %v527
    %v784 = vpack.c.b16 %v532, %v528
    %v785 = vpack.c.b16 %v537, %v533
    %v786 = vpack.c.b16 %v538, %v534
    %v787 = vpack.c.b16 %v539, %v535
    %v788 = vpack.c.b16 %v540, %v536
    %v789 = vpack.c.b16 %v545, %v541
    %v790 = vpack.c.b16 %v546, %v542
    %v791 = vpack.c.b16 %v547, %v543
    %v792 = vpack.c.b16 %v548, %v544
    %v793 = vpack.c.b16 %v553, %v549
    %v794 = vpack.c.b16 %v554, %v550
    %v795 = vpack.c.b16 %v555, %v551
    %v796 = vpack.c.b16 %v556, %v552
    %v797 = vpack.c.b16 %v561, %v557
    %v798 = vpack.c.b16 %v562, %v558
    %v799 = vpack.c.b16 %v563, %v559
    %v800 = vpack.c.b16 %v564, %v560
    %v801 = vpack.c.b16 %v569, %v565
    %v802 = vpack.c.b16 %v570, %v566
    %v803 = vpack.c.b16 %v571, %v567
    %v804 = vpack.c.b16 %v572, %v568
    %v805 = vpack.c.b16 %v577, %v573
    %v806 = vpack.c.b16 %v578, %v574
    %v807 = vpack.c.b16 %v579, %v575
    %v808 = vpack.c.b16 %v580, %v576
    %v809 = vpack.c.b16 %v585, %v581
    %v810 = vpack.c.b16 %v586, %v582
    %v811 = vpack.c.b16 %v587, %v583
    %v812 = vpack.c.b16 %v588, %v584
    %v813 = vpack.c.b16 %v593, %v589
    %v814 = vpack.c.b16 %v594, %v590
    %v815 = vpack.c.b16 %v595, %v591
    %v816 = vpack.c.b16 %v596, %v592
    %v817 = vpack.c.b16 %v601, %v597
    %v818 = vpack.c.b16 %v602, %v598
    %v819 = vpack.c.b16 %v603, %v599
    %v820 = vpack.c.b16 %v604, %v600
    %v821 = vpack.c.b16 %v609, %v605
    %v822 = vpack.c.b16 %v610, %v606
    %v823 = vpack.c.b16 %v611, %v607
    %v824 = vpack.c.b16 %v612, %v608
    %v825 = vpack.c.b16 %v617, %v613
    %v826 = vpack.c.b16 %v618, %v614
    %v827 = vpack.c.b16 %v619, %v615
    %v828 = vpack.c.b16 %v620, %v616
    %v829 = vpack.c.b16 %v625, %v621
    %v830 = vpack.c.b16 %v626, %v622
    %v831 = vpack.c.b16 %v627, %v623
    %v832 = vpack.c.b16 %v628, %v624
    %v833 = vpack.c.b16 %v633, %v629
    %v834 = vpack.c.b16 %v634, %v630
    %v835 = vpack.c.b16 %v635, %v631
    %v836 = vpack.c.b16 %v636, %v632
    %v837 = vpack.c.b16 %v641, %v637
    %v838 = vpack.c.b16 %v642, %v638
    %v839 = vpack.c.b16 %v643, %v639
    %v840 = vpack.c.b16 %v644, %v640
    %v841 = vpack.c.b16 %v649, %v645
    %v842 = vpack.c.b16 %v650, %v646
    %v843 = vpack.c.b16 %v651, %v647
    %v844 = vpack.c.b16 %v652, %v648
    %v845 = vpack.c.b16 %v657, %v653
    %v846 = vpack.c.b16 %v658, %v654
    %v847 = vpack.c.b16 %v659, %v655
    %v848 = vpack.c.b16 %v660, %v656
    %v849 = vpack.c.b16 %v665, %v661
    %v850 = vpack.c.b16 %v666, %v662
    %v851 = vpack.c.b16 %v667, %v663
    %v852 = vpack.c.b16 %v668, %v664
    %v853 = vpack.c.b16 %v673, %v669
    %v854 = vpack.c.b16 %v674, %v670
    %v855 = vpack.c.b16 %v675, %v671
    %v856 = vpack.c.b16 %v676, %v672
    %v857 = vpack.c.b16 %v681, %v677
    %v858 = vpack.c.b16 %v682, %v678
    %v859 = vpack.c.b16 %v683, %v679
    %v860 = vpack.c.b16 %v684, %v680
    %v861 = vpack.c.b16 %v689, %v685
    %v862 = vpack.c.b16 %v690, %v686
    %v863 = vpack.c.b16 %v691, %v687
    %v864 = vpack.c.b16 %v692, %v688
    %v865 = vpack.c.b16 %v697, %v693
    %v866 = vpack.c.b16 %v698, %v694
    %v867 = vpack.c.b16 %v699, %v695
    %v868 = vpack.c.b16 %v700, %v696
    %v869 = vpack.c.b16 %v705, %v701
    %v870 = vpack.c.b16 %v706, %v702
    %v871 = vpack.c.b16 %v707, %v703
    %v872 = vpack.c.b16 %v708, %v704
    %v873 = vpack.c.b16 %v713, %v709
    %v874 = vpack.c.b16 %v714, %v710
    %v875 = vpack.c.b16 %v715, %v711
    %v876 = vpack.c.b16 %v716, %v712
    %v877 = vpack.c.b16 %v721, %v717
    %v878 = vpack.c.b16 %v722, %v718
    %v879 = vpack.c.b16 %v723, %v719
    %v880 = vpack.c.b16 %v724, %v720
    %v881 = vpack.c.b16 %v729, %v725
    %v882 = vpack.c.b16 %v730, %v726
    %v883 = vpack.c.b16 %v731, %v727
    %v884 = vpack.c.b16 %v732, %v728
    %v885 = vpack.c.b16 %v737, %v733
    %v886 = vpack.c.b16 %v738, %v734
    %v887 = vpack.c.b16 %v739, %v735
    %v888 = vpack.c.b16 %v740, %v736
    %v889 = vpack.c.b16 %v745, %v741
    %v890 = vpack.c.b16 %v746, %v742
    %v891 = vpack.c.b16 %v747, %v743
    %v892 = vpack.c.b16 %v748, %v744
    %v893 = vpack.c.b16 %v753, %v749
    %v894 = vpack.c.b16 %v754, %v750
    %v895 = vpack.c.b16 %v755, %v751
    %v896 = vpack.c.b16 %v756, %v752
    %v897 = vpack.c.b16 %v761, %v757
    %v898 = vpack.c.b16 %v762, %v758
    %v899 = vpack.c.b16 %v763, %v759
    %v900 = vpack.c.b16 %v764, %v760
    %v901 = vpack.c.b16 %v769, %v765
    %v902 = vpack.c.b16 %v770, %v766
    %v903 = vpack.c.b16 %v771, %v767
    %v904 = vpack.c.b16 %v772, %v768
    %v905 = vpack.c.b16 %v777, %v773
    %v906 = vpack.c.b16 %v778, %v774
    %v907 = vpack.c.b16 %v779, %v775
    %v908 = vpack.c.b16 %v780, %v776
    %1037 = vmatpush.bf16.msra.mxu0 %v809
    %1038 = vmatpush.bf16.msra.mxu0 %v805
    %1039 = vmatpush.bf16.msra.mxu0 %v801
    %1040 = vmatpush.bf16.msra.mxu0 %v797
    %1041 = vmatpush.bf16.msra.mxu0 %v793
    %1042 = vmatpush.bf16.msra.mxu0 %v789
    %1043 = vmatpush.bf16.msra.mxu0 %v785
    %1044 = vmatpush.bf16.msra.mxu0 %v781
    %1045 = vmatmul.bf16.gmra.mxu0 %v265
    %v1046 = vpop.f32.mrf.mxu0
    %v1047 = vadd.f32 0.0, %v1046
    %v1048 = vpop.f32.mrf.mxu0
    %1049 = vdwg.mxu0
    %1050 = vmatpush.bf16.msra.mxu0 %v841
    %1051 = vmatpush.bf16.msra.mxu0 %v837
    %1052 = vmatpush.bf16.msra.mxu0 %v833
    %1053 = vmatpush.bf16.msra.mxu0 %v829
    %1054 = vmatpush.bf16.msra.mxu0 %v825
    %1055 = vmatpush.bf16.msra.mxu0 %v821
    %1056 = vmatpush.bf16.msra.mxu0 %v817
    %1057 = vmatpush.bf16.msra.mxu0 %v813
    %1058 = vmatmul.bf16.gmra.mxu0 %v266
    %v1059 = vpop.f32.mrf.mxu0
    %v1060 = vadd.f32 %v1047, %v1059
    %v1061 = vpop.f32.mrf.mxu0
    %1062 = vdwg.mxu0
    %1063 = vmatpush.bf16.msra.mxu0 %v873
    %1064 = vmatpush.bf16.msra.mxu0 %v869
    %1065 = vmatpush.bf16.msra.mxu0 %v865
    %1066 = vmatpush.bf16.msra.mxu0 %v861
    %1067 = vmatpush.bf16.msra.mxu0 %v857
    %1068 = vmatpush.bf16.msra.mxu0 %v853
    %1069 = vmatpush.bf16.msra.mxu0 %v849
    %1070 = vmatpush.bf16.msra.mxu0 %v845
    %1071 = vmatmul.bf16.gmra.mxu0 %v267
    %v1072 = vpop.f32.mrf.mxu0
    %v1073 = vadd.f32 %v1060, %v1072
    %v1074 = vpop.f32.mrf.mxu0
    %1075 = vdwg.mxu0
    %1076 = vmatpush.bf16.msra.mxu0 %v905
    %1077 = vmatpush.bf16.msra.mxu0 %v901
    %1078 = vmatpush.bf16.msra.mxu0 %v897
    %1079 = vmatpush.bf16.msra.mxu0 %v893
    %1080 = vmatpush.bf16.msra.mxu0 %v889
    %1081 = vmatpush.bf16.msra.mxu0 %v885
    %1082 = vmatpush.bf16.msra.mxu0 %v881
    %1083 = vmatpush.bf16.msra.mxu0 %v877
    %1084 = vmatmul.bf16.gmra.mxu0 %v268
    %v1085 = vpop.f32.mrf.mxu0
    %v1086 = vadd.f32 %v1073, %v1085
    %v1087 = vpop.f32.mrf.mxu0
    %1088 = vdwg.mxu0
    %1089 = vmatpush.bf16.msra.mxu0 %v810
    %1090 = vmatpush.bf16.msra.mxu0 %v806
    %1091 = vmatpush.bf16.msra.mxu0 %v802
    %1092 = vmatpush.bf16.msra.mxu0 %v798
    %1093 = vmatpush.bf16.msra.mxu0 %v794
    %1094 = vmatpush.bf16.msra.mxu0 %v790
    %1095 = vmatpush.bf16.msra.mxu0 %v786
    %1096 = vmatpush.bf16.msra.mxu0 %v782
    %1097 = vmatmul.bf16.gmra.mxu0 %v265
    %v1098 = vpop.f32.mrf.mxu0
    %v1099 = vadd.f32 0.0, %v1098
    %v1100 = vpop.f32.mrf.mxu0
    %1101 = vdwg.mxu0
    %1102 = vmatpush.bf16.msra.mxu0 %v842
    %1103 = vmatpush.bf16.msra.mxu0 %v838
    %1104 = vmatpush.bf16.msra.mxu0 %v834
    %1105 = vmatpush.bf16.msra.mxu0 %v830
    %1106 = vmatpush.bf16.msra.mxu0 %v826
    %1107 = vmatpush.bf16.msra.mxu0 %v822
    %1108 = vmatpush.bf16.msra.mxu0 %v818
    %1109 = vmatpush.bf16.msra.mxu0 %v814
    %1110 = vmatmul.bf16.gmra.mxu0 %v266
    %v1111 = vpop.f32.mrf.mxu0
    %v1112 = vadd.f32 %v1099, %v1111
    %v1113 = vpop.f32.mrf.mxu0
    %1114 = vdwg.mxu0
    %1115 = vmatpush.bf16.msra.mxu0 %v874
    %1116 = vmatpush.bf16.msra.mxu0 %v870
    %1117 = vmatpush.bf16.msra.mxu0 %v866
    %1118 = vmatpush.bf16.msra.mxu0 %v862
    %1119 = vmatpush.bf16.msra.mxu0 %v858
    %1120 = vmatpush.bf16.msra.mxu0 %v854
    %1121 = vmatpush.bf16.msra.mxu0 %v850
    %1122 = vmatpush.bf16.msra.mxu0 %v846
    %1123 = vmatmul.bf16.gmra.mxu0 %v267
    %v1124 = vpop.f32.mrf.mxu0
    %v1125 = vadd.f32 %v1112, %v1124
    %v1126 = vpop.f32.mrf.mxu0
    %1127 = vdwg.mxu0
    %1128 = vmatpush.bf16.msra.mxu0 %v906
    %1129 = vmatpush.bf16.msra.mxu0 %v902
    %1130 = vmatpush.bf16.msra.mxu0 %v898
    %1131 = vmatpush.bf16.msra.mxu0 %v894
    %1132 = vmatpush.bf16.msra.mxu0 %v890
    %1133 = vmatpush.bf16.msra.mxu0 %v886
    %1134 = vmatpush.bf16.msra.mxu0 %v882
    %1135 = vmatpush.bf16.msra.mxu0 %v878
    %1136 = vmatmul.bf16.gmra.mxu0 %v268
    %v1137 = vpop.f32.mrf.mxu0
    %v1138 = vadd.f32 %v1125, %v1137
    %v1139 = vpop.f32.mrf.mxu0
    %1140 = vdwg.mxu0
    %1141 = vmatpush.bf16.msra.mxu0 %v811
    %1142 = vmatpush.bf16.msra.mxu0 %v807
    %1143 = vmatpush.bf16.msra.mxu0 %v803
    %1144 = vmatpush.bf16.msra.mxu0 %v799
    %1145 = vmatpush.bf16.msra.mxu0 %v795
    %1146 = vmatpush.bf16.msra.mxu0 %v791
    %1147 = vmatpush.bf16.msra.mxu0 %v787
    %1148 = vmatpush.bf16.msra.mxu0 %v783
    %1149 = vmatmul.bf16.gmra.mxu0 %v265
    %v1150 = vpop.f32.mrf.mxu0
    %v1151 = vadd.f32 0.0, %v1150
    %v1152 = vpop.f32.mrf.mxu0
    %1153 = vdwg.mxu0
    %1154 = vmatpush.bf16.msra.mxu0 %v843
    %1155 = vmatpush.bf16.msra.mxu0 %v839
    %1156 = vmatpush.bf16.msra.mxu0 %v835
    %1157 = vmatpush.bf16.msra.mxu0 %v831
    %1158 = vmatpush.bf16.msra.mxu0 %v827
    %1159 = vmatpush.bf16.msra.mxu0 %v823
    %1160 = vmatpush.bf16.msra.mxu0 %v819
    %1161 = vmatpush.bf16.msra.mxu0 %v815
    %1162 = vmatmul.bf16.gmra.mxu0 %v266
    %v1163 = vpop.f32.mrf.mxu0
    %v1164 = vadd.f32 %v1151, %v1163
    %v1165 = vpop.f32.mrf.mxu0
    %1166 = vdwg.mxu0
    %1167 = vmatpush.bf16.msra.mxu0 %v875
    %1168 = vmatpush.bf16.msra.mxu0 %v871
    %1169 = vmatpush.bf16.msra.mxu0 %v867
    %1170 = vmatpush.bf16.msra.mxu0 %v863
    %1171 = vmatpush.bf16.msra.mxu0 %v859
    %1172 = vmatpush.bf16.msra.mxu0 %v855
    %1173 = vmatpush.bf16.msra.mxu0 %v851
    %1174 = vmatpush.bf16.msra.mxu0 %v847
    %1175 = vmatmul.bf16.gmra.mxu0 %v267
    %v1176 = vpop.f32.mrf.mxu0
    %v1177 = vadd.f32 %v1164, %v1176
    %v1178 = vpop.f32.mrf.mxu0
    %1179 = vdwg.mxu0
    %1180 = vmatpush.bf16.msra.mxu0 %v907
    %1181 = vmatpush.bf16.msra.mxu0 %v903
    %1182 = vmatpush.bf16.msra.mxu0 %v899
    %1183 = vmatpush.bf16.msra.mxu0 %v895
    %1184 = vmatpush.bf16.msra.mxu0 %v891
    %1185 = vmatpush.bf16.msra.mxu0 %v887
    %1186 = vmatpush.bf16.msra.mxu0 %v883
    %1187 = vmatpush.bf16.msra.mxu0 %v879
    %1188 = vmatmul.bf16.gmra.mxu0 %v268
    %v1189 = vpop.f32.mrf.mxu0
    %v1190 = vadd.f32 %v1177, %v1189
    %v1191 = vpop.f32.mrf.mxu0
    %1192 = vdwg.mxu0
    %1193 = vmatpush.bf16.msra.mxu0 %v812
    %1194 = vmatpush.bf16.msra.mxu0 %v808
    %1195 = vmatpush.bf16.msra.mxu0 %v804
    %1196 = vmatpush.bf16.msra.mxu0 %v800
    %1197 = vmatpush.bf16.msra.mxu0 %v796
    %1198 = vmatpush.bf16.msra.mxu0 %v792
    %1199 = vmatpush.bf16.msra.mxu0 %v788
    %1200 = vmatpush.bf16.msra.mxu0 %v784
    %1201 = vmatmul.bf16.gmra.mxu0 %v265
    %v1202 = vpop.f32.mrf.mxu0
    %v1203 = vadd.f32 0.0, %v1202
    %v1204 = vpop.f32.mrf.mxu0
    %1205 = vdwg.mxu0
    %1206 = vmatpush.bf16.msra.mxu0 %v844
    %1207 = vmatpush.bf16.msra.mxu0 %v840
    %1208 = vmatpush.bf16.msra.mxu0 %v836
    %1209 = vmatpush.bf16.msra.mxu0 %v832
    %1210 = vmatpush.bf16.msra.mxu0 %v828
    %1211 = vmatpush.bf16.msra.mxu0 %v824
    %1212 = vmatpush.bf16.msra.mxu0 %v820
    %1213 = vmatpush.bf16.msra.mxu0 %v816
    %1214 = vmatmul.bf16.gmra.mxu0 %v266
    %v1215 = vpop.f32.mrf.mxu0
    %v1216 = vadd.f32 %v1203, %v1215
    %v1217 = vpop.f32.mrf.mxu0
    %1218 = vdwg.mxu0
    %1219 = vmatpush.bf16.msra.mxu0 %v876
    %1220 = vmatpush.bf16.msra.mxu0 %v872
    %1221 = vmatpush.bf16.msra.mxu0 %v868
    %1222 = vmatpush.bf16.msra.mxu0 %v864
    %1223 = vmatpush.bf16.msra.mxu0 %v860
    %1224 = vmatpush.bf16.msra.mxu0 %v856
    %1225 = vmatpush.bf16.msra.mxu0 %v852
    %1226 = vmatpush.bf16.msra.mxu0 %v848
    %1227 = vmatmul.bf16.gmra.mxu0 %v267
    %v1228 = vpop.f32.mrf.mxu0
    %v1229 = vadd.f32 %v1216, %v1228
    %v1230 = vpop.f32.mrf.mxu0
    %1231 = vdwg.mxu0
    %1232 = vmatpush.bf16.msra.mxu0 %v908
    %1233 = vmatpush.bf16.msra.mxu0 %v904
    %1234 = vmatpush.bf16.msra.mxu0 %v900
    %1235 = vmatpush.bf16.msra.mxu0 %v896
    %1236 = vmatpush.bf16.msra.mxu0 %v892
    %1237 = vmatpush.bf16.msra.mxu0 %v888
    %1238 = vmatpush.bf16.msra.mxu0 %v884
    %1239 = vmatpush.bf16.msra.mxu0 %v880
    %1240 = vmatmul.bf16.gmra.mxu0 %v268
    %v1241 = vpop.f32.mrf.mxu0
    %v1242 = vadd.f32 %v1229, %v1241
    %v1243 = vpop.f32.mrf.mxu0
    %1244 = vdwg.mxu0
    %v1245 = vpack.c.bf16 %v1138, %v1086
    %v1246 = vpack.c.bf16 %v1242, %v1190
    %v1247 = vld [vmem:[#allocation10] sm:$0xf]
    %1249 = vst [vmem:[#allocation1] ss:$9 sm:$0xff] %v1247
    %v1250 = vld [vmem:[#allocation1] sm:$0xff]
    %v1251 = vld [vmem:[#allocation1 + $0x9] sm:$0xff]
    %v1252 = vld [vmem:[#allocation1 + $0x12] sm:$0xff]
    %v1253 = vld [vmem:[#allocation1 + $0x1b] sm:$0xff]
    %v1254 = vpack.i.b16 %v1250, %v1250
    %v1256 = vperm.slane %v1254, 0
    %v1257 = vpack.i.b16 %v1251, %v1251
    %v1259 = vperm.slane %v1257, 0
    %v1260 = vpack.i.b16 %v1252, %v1252
    %v1262 = vperm.slane %v1260, 0
    %v1263 = vpack.i.b16 %v1253, %v1253
    %v1265 = vperm.slane %v1263, 0
    %v1266 = vunpack.c.l.bf16 %v1245
    %v1267 = vunpack.c.h.bf16 %v1245
    %v1268 = vunpack.c.l.bf16 %v1246
    %v1269 = vunpack.c.h.bf16 %v1246
    %v1270 = vunpack.c.l.bf16 %v1256
    %v1271 = vunpack.c.l.bf16 %v1259
    %v1272 = vunpack.c.l.bf16 %v1262
    %v1273 = vunpack.c.l.bf16 %v1265
    %v1274 = vadd.f32 %v1266, %v1270
    %v1275 = vadd.f32 %v1267, %v1271
    %v1276 = vadd.f32 %v1268, %v1272
    %v1277 = vadd.f32 %v1269, %v1273
    %v1278 = vpack.c.bf16 %v1275, %v1274
    %v1279 = vpack.c.bf16 %v1277, %v1276
    %v1280 = vunpack.c.l.bf16 %v1278
    %v1281 = vunpack.c.h.bf16 %v1278
    %v1282 = vunpack.c.l.bf16 %v1279
    %v1283 = vunpack.c.h.bf16 %v1279
    %v1284 = vmax.f32 %v1280, 0.0
    %v1285 = vmax.f32 %v1281, 0.0
    %v1286 = vmax.f32 %v1282, 0.0
    %v1287 = vmax.f32 %v1283, 0.0
    %v1288 = vpack.c.bf16 %v1284, %v1284
    %v1289 = vpack.c.bf16 %v1285, %v1285
    %v1290 = vpack.c.bf16 %v1286, %v1286
    %v1291 = vpack.c.bf16 %v1287, %v1287
    %v1292 = vld [vmem:[#allocation11] sm:$0xf]
    %v1293 = vld [vmem:[#allocation11 + $0x4] sm:$0xf]
    %v1294 = vld [vmem:[#allocation11 + $0x8] sm:$0xf]
    %v1295 = vld [vmem:[#allocation11 + $0xc] sm:$0xf]
    %v1296 = vld [vmem:[#allocation11 + $0x10] sm:$0xf]
    %v1297 = vld [vmem:[#allocation11 + $0x14] sm:$0xf]
    %v1298 = vld [vmem:[#allocation11 + $0x18] sm:$0xf]
    %v1299 = vld [vmem:[#allocation11 + $0x1c] sm:$0xf]
    %v1300 = vld [vmem:[#allocation11 + $0x20] sm:$0xf]
    %v1301 = vld [vmem:[#allocation11 + $0x24] sm:$0xf]
    %v1302 = vld [vmem:[#allocation11 + $0x28] sm:$0xf]
    %v1303 = vld [vmem:[#allocation11 + $0x2c] sm:$0xf]
    %v1304 = vld [vmem:[#allocation11 + $0x30] sm:$0xf]
    %v1305 = vld [vmem:[#allocation11 + $0x34] sm:$0xf]
    %v1306 = vld [vmem:[#allocation11 + $0x38] sm:$0xf]
    %v1307 = vld [vmem:[#allocation11 + $0x3c] sm:$0xf]
    %v1308 = vld [vmem:[#allocation11 + $0x40] sm:$0xf]
    %v1309 = vld [vmem:[#allocation11 + $0x44] sm:$0xf]
    %v1310 = vld [vmem:[#allocation11 + $0x48] sm:$0xf]
    %v1311 = vld [vmem:[#allocation11 + $0x4c] sm:$0xf]
    %v1312 = vld [vmem:[#allocation11 + $0x50] sm:$0xf]
    %v1313 = vld [vmem:[#allocation11 + $0x54] sm:$0xf]
    %v1314 = vld [vmem:[#allocation11 + $0x58] sm:$0xf]
    %v1315 = vld [vmem:[#allocation11 + $0x5c] sm:$0xf]
    %v1316 = vld [vmem:[#allocation11 + $0x60] sm:$0xf]
    %v1317 = vld [vmem:[#allocation11 + $0x64] sm:$0xf]
    %v1318 = vld [vmem:[#allocation11 + $0x68] sm:$0xf]
    %v1319 = vld [vmem:[#allocation11 + $0x6c] sm:$0xf]
    %v1320 = vld [vmem:[#allocation11 + $0x70] sm:$0xf]
    %v1321 = vld [vmem:[#allocation11 + $0x74] sm:$0xf]
    %v1322 = vld [vmem:[#allocation11 + $0x78] sm:$0xf]
    %v1323 = vld [vmem:[#allocation11 + $0x7c] sm:$0xf]
    %v1324 = vld [vmem:[#allocation11 + $0x80] sm:$0xf]
    %v1325 = vld [vmem:[#allocation11 + $0x84] sm:$0xf]
    %v1326 = vld [vmem:[#allocation11 + $0x88] sm:$0xf]
    %v1327 = vld [vmem:[#allocation11 + $0x8c] sm:$0xf]
    %v1328 = vld [vmem:[#allocation11 + $0x90] sm:$0xf]
    %v1329 = vld [vmem:[#allocation11 + $0x94] sm:$0xf]
    %v1330 = vld [vmem:[#allocation11 + $0x98] sm:$0xf]
    %v1331 = vld [vmem:[#allocation11 + $0x9c] sm:$0xf]
    %v1332 = vld [vmem:[#allocation11 + $0xa0] sm:$0xf]
    %v1333 = vld [vmem:[#allocation11 + $0xa4] sm:$0xf]
    %v1334 = vld [vmem:[#allocation11 + $0xa8] sm:$0xf]
    %v1335 = vld [vmem:[#allocation11 + $0xac] sm:$0xf]
    %v1336 = vld [vmem:[#allocation11 + $0xb0] sm:$0xf]
    %v1337 = vld [vmem:[#allocation11 + $0xb4] sm:$0xf]
    %v1338 = vld [vmem:[#allocation11 + $0xb8] sm:$0xf]
    %v1339 = vld [vmem:[#allocation11 + $0xbc] sm:$0xf]
    %v1340 = vld [vmem:[#allocation11 + $0xc0] sm:$0xf]
    %v1341 = vld [vmem:[#allocation11 + $0xc4] sm:$0xf]
    %v1342 = vld [vmem:[#allocation11 + $0xc8] sm:$0xf]
    %v1343 = vld [vmem:[#allocation11 + $0xcc] sm:$0xf]
    %v1344 = vld [vmem:[#allocation11 + $0xd0] sm:$0xf]
    %v1345 = vld [vmem:[#allocation11 + $0xd4] sm:$0xf]
    %v1346 = vld [vmem:[#allocation11 + $0xd8] sm:$0xf]
    %v1347 = vld [vmem:[#allocation11 + $0xdc] sm:$0xf]
    %v1348 = vld [vmem:[#allocation11 + $0xe0] sm:$0xf]
    %v1349 = vld [vmem:[#allocation11 + $0xe4] sm:$0xf]
    %v1350 = vld [vmem:[#allocation11 + $0xe8] sm:$0xf]
    %v1351 = vld [vmem:[#allocation11 + $0xec] sm:$0xf]
    %v1352 = vld [vmem:[#allocation11 + $0xf0] sm:$0xf]
    %v1353 = vld [vmem:[#allocation11 + $0xf4] sm:$0xf]
    %v1354 = vld [vmem:[#allocation11 + $0xf8] sm:$0xf]
    %v1355 = vld [vmem:[#allocation11 + $0xfc] sm:$0xf]
    %v1356 = vld [vmem:[%s6] sm:$0x1]
    %v1358 = vperm.slane %v1356, 0
    %v1424 = vunpack.c.l.b16 %v1292
    %v1425 = vunpack.c.l.b16 %v1293
    %v1426 = vunpack.c.l.b16 %v1294
    %v1427 = vunpack.c.l.b16 %v1295
    %v1428 = vunpack.c.l.b16 %v1296
    %v1429 = vunpack.c.l.b16 %v1297
    %v1430 = vunpack.c.l.b16 %v1298
    %v1431 = vunpack.c.l.b16 %v1299
    %v1432 = vunpack.c.l.b16 %v1300
    %v1433 = vunpack.c.l.b16 %v1301
    %v1434 = vunpack.c.l.b16 %v1302
    %v1435 = vunpack.c.l.b16 %v1303
    %v1436 = vunpack.c.l.b16 %v1304
    %v1437 = vunpack.c.l.b16 %v1305
    %v1438 = vunpack.c.l.b16 %v1306
    %v1439 = vunpack.c.l.b16 %v1307
    %v1440 = vunpack.c.l.b16 %v1308
    %v1441 = vunpack.c.l.b16 %v1309
    %v1442 = vunpack.c.l.b16 %v1310
    %v1443 = vunpack.c.l.b16 %v1311
    %v1444 = vunpack.c.l.b16 %v1312
    %v1445 = vunpack.c.l.b16 %v1313
    %v1446 = vunpack.c.l.b16 %v1314
    %v1447 = vunpack.c.l.b16 %v1315
    %v1448 = vunpack.c.l.b16 %v1316
    %v1449 = vunpack.c.l.b16 %v1317
    %v1450 = vunpack.c.l.b16 %v1318
    %v1451 = vunpack.c.l.b16 %v1319
    %v1452 = vunpack.c.l.b16 %v1320
    %v1453 = vunpack.c.l.b16 %v1321
    %v1454 = vunpack.c.l.b16 %v1322
    %v1455 = vunpack.c.l.b16 %v1323
    %v1456 = vunpack.c.l.b16 %v1324
    %v1457 = vunpack.c.l.b16 %v1325
    %v1458 = vunpack.c.l.b16 %v1326
    %v1459 = vunpack.c.l.b16 %v1327
    %v1460 = vunpack.c.l.b16 %v1328
    %v1461 = vunpack.c.l.b16 %v1329
    %v1462 = vunpack.c.l.b16 %v1330
    %v1463 = vunpack.c.l.b16 %v1331
    %v1464 = vunpack.c.l.b16 %v1332
    %v1465 = vunpack.c.l.b16 %v1333
    %v1466 = vunpack.c.l.b16 %v1334
    %v1467 = vunpack.c.l.b16 %v1335
    %v1468 = vunpack.c.l.b16 %v1336
    %v1469 = vunpack.c.l.b16 %v1337
    %v1470 = vunpack.c.l.b16 %v1338
    %v1471 = vunpack.c.l.b16 %v1339
    %v1472 = vunpack.c.l.b16 %v1340
    %v1473 = vunpack.c.l.b16 %v1341
    %v1474 = vunpack.c.l.b16 %v1342
    %v1475 = vunpack.c.l.b16 %v1343
    %v1476 = vunpack.c.l.b16 %v1344
    %v1477 = vunpack.c.l.b16 %v1345
    %v1478 = vunpack.c.l.b16 %v1346
    %v1479 = vunpack.c.l.b16 %v1347
    %v1480 = vunpack.c.l.b16 %v1348
    %v1481 = vunpack.c.l.b16 %v1349
    %v1482 = vunpack.c.l.b16 %v1350
    %v1483 = vunpack.c.l.b16 %v1351
    %v1484 = vunpack.c.l.b16 %v1352
    %v1485 = vunpack.c.l.b16 %v1353
    %v1486 = vunpack.c.l.b16 %v1354
    %v1487 = vunpack.c.l.b16 %v1355
    %v1488 = vpack.c.b16 %v1425, %v1424
    %v1489 = vpack.c.b16 %v1427, %v1426
    %v1490 = vpack.c.b16 %v1429, %v1428
    %v1491 = vpack.c.b16 %v1431, %v1430
    %v1492 = vpack.c.b16 %v1433, %v1432
    %v1493 = vpack.c.b16 %v1435, %v1434
    %v1494 = vpack.c.b16 %v1437, %v1436
    %v1495 = vpack.c.b16 %v1439, %v1438
    %v1496 = vpack.c.b16 %v1441, %v1440
    %v1497 = vpack.c.b16 %v1443, %v1442
    %v1498 = vpack.c.b16 %v1445, %v1444
    %v1499 = vpack.c.b16 %v1447, %v1446
    %v1500 = vpack.c.b16 %v1449, %v1448
    %v1501 = vpack.c.b16 %v1451, %v1450
    %v1502 = vpack.c.b16 %v1453, %v1452
    %v1503 = vpack.c.b16 %v1455, %v1454
    %v1504 = vpack.c.b16 %v1457, %v1456
    %v1505 = vpack.c.b16 %v1459, %v1458
    %v1506 = vpack.c.b16 %v1461, %v1460
    %v1507 = vpack.c.b16 %v1463, %v1462
    %v1508 = vpack.c.b16 %v1465, %v1464
    %v1509 = vpack.c.b16 %v1467, %v1466
    %v1510 = vpack.c.b16 %v1469, %v1468
    %v1511 = vpack.c.b16 %v1471, %v1470
    %v1512 = vpack.c.b16 %v1473, %v1472
    %v1513 = vpack.c.b16 %v1475, %v1474
    %v1514 = vpack.c.b16 %v1477, %v1476
    %v1515 = vpack.c.b16 %v1479, %v1478
    %v1516 = vpack.c.b16 %v1481, %v1480
    %v1517 = vpack.c.b16 %v1483, %v1482
    %v1518 = vpack.c.b16 %v1485, %v1484
    %v1519 = vpack.c.b16 %v1487, %v1486
    %1552 = vmatpush.bf16.msra.mxu0 %v1495
    %1553 = vmatpush.bf16.msra.mxu0 %v1494
    %1554 = vmatpush.bf16.msra.mxu0 %v1493
    %1555 = vmatpush.bf16.msra.mxu0 %v1492
    %1556 = vmatpush.bf16.msra.mxu0 %v1491
    %1557 = vmatpush.bf16.msra.mxu0 %v1490
    %1558 = vmatpush.bf16.msra.mxu0 %v1489
    %1559 = vmatpush.bf16.msra.mxu0 %v1488
    %1560 = vmatmul.bf16.gmra.mxu0 %v1288
    %v1561 = vpop.f32.mrf.mxu0
    %v1562 = vadd.f32 %v1358, %v1561
    %v1563 = vpop.f32.mrf.mxu0
    %1564 = vdwg.mxu0
    %1565 = vmatpush.bf16.msra.mxu0 %v1503
    %1566 = vmatpush.bf16.msra.mxu0 %v1502
    %1567 = vmatpush.bf16.msra.mxu0 %v1501
    %1568 = vmatpush.bf16.msra.mxu0 %v1500
    %1569 = vmatpush.bf16.msra.mxu0 %v1499
    %1570 = vmatpush.bf16.msra.mxu0 %v1498
    %1571 = vmatpush.bf16.msra.mxu0 %v1497
    %1572 = vmatpush.bf16.msra.mxu0 %v1496
    %1573 = vmatmul.bf16.gmra.mxu0 %v1289
    %v1574 = vpop.f32.mrf.mxu0
    %v1575 = vadd.f32 %v1562, %v1574
    %v1576 = vpop.f32.mrf.mxu0
    %1577 = vdwg.mxu0
    %1578 = vmatpush.bf16.msra.mxu0 %v1511
    %1579 = vmatpush.bf16.msra.mxu0 %v1510
    %1580 = vmatpush.bf16.msra.mxu0 %v1509
    %1581 = vmatpush.bf16.msra.mxu0 %v1508
    %1582 = vmatpush.bf16.msra.mxu0 %v1507
    %1583 = vmatpush.bf16.msra.mxu0 %v1506
    %1584 = vmatpush.bf16.msra.mxu0 %v1505
    %1585 = vmatpush.bf16.msra.mxu0 %v1504
    %1586 = vmatmul.bf16.gmra.mxu0 %v1290
    %v1587 = vpop.f32.mrf.mxu0
    %v1588 = vadd.f32 %v1575, %v1587
    %v1589 = vpop.f32.mrf.mxu0
    %1590 = vdwg.mxu0
    %1591 = vmatpush.bf16.msra.mxu0 %v1519
    %1592 = vmatpush.bf16.msra.mxu0 %v1518
    %1593 = vmatpush.bf16.msra.mxu0 %v1517
    %1594 = vmatpush.bf16.msra.mxu0 %v1516
    %1595 = vmatpush.bf16.msra.mxu0 %v1515
    %1596 = vmatpush.bf16.msra.mxu0 %v1514
    %1597 = vmatpush.bf16.msra.mxu0 %v1513
    %1598 = vmatpush.bf16.msra.mxu0 %v1512
    %1599 = vmatmul.bf16.gmra.mxu0 %v1291
    %v1600 = vpop.f32.mrf.mxu0
    %v1601 = vadd.f32 %v1588, %v1600
    %v1602 = vpop.f32.mrf.mxu0
    %1603 = vdwg.mxu0
    %1604 = vst [vmem:[#allocation13] sm:$0xff] %v1601
    // Predicated region
    $region54: #{tpu_custom_call.1} parent=1 // pred_check
      _
    $region55: #{tpu_custom_call.1} parent=1 // pred_check_branch
      %1606 = sbr.rel (0) target = $region57
    $region56: #{tpu_custom_call.1} parent=1 // pred_region
      %1608 = vsyncadd [#allocation4], 0
      %s1610 = sshll.u32 [#allocation13], 4
      %s1611 = int_to_ptr.vmem [resolvable:$true] %s1610
      %s1612 = sshll.u32 %s7, 4
      %s1613 = int_to_ptr.hbm [resolvable:$true] %s1612
      %1615 = dma.vmem_to_hbm [thread:$0]  %s1611, 128, %s1613, [#allocation4]
    $region57: #{tpu_custom_call.1} parent=1 // pred_fallthru
      _
    // Predicated region
    $region58: #{tpu_custom_call.1} parent=1 // pred_check
      _
    $region59: #{tpu_custom_call.1} parent=1 // pred_check_branch
      %1617 = sbr.rel (0) target = $region61
    $region60: #{tpu_custom_call.1} parent=1 // pred_region
      %1619 = dma.done [#allocation4], 128
    $region61: #{tpu_custom_call.1} parent=1 // pred_fallthru
      _
    %1620 = vsyncpa [#allocation3], 1
    %1621 = vsyncpa [#allocation6], 1
    %1622 = vsyncpa [#allocation9], 1
    %1623 = vsyncpa [#allocation12], 1
    %1624 = vsyncpa [#allocation4], 1

</llo_original>
